<compile_context>
chip_gen: v7x
topology: tpu7x:2x2x1
jax: 0.10.0
libtpu: 0.0.40
codegen_flags: <defaults>
</compile_context>

<pallas_src>
import functools

import jax
import jax.numpy as jnp
from jax import lax
from jax.experimental import pallas as pl
from jax.experimental.pallas import tpu as pltpu


def _policy_kernel(x_ref, w1_ref, b1_ref, w2_ref, b2_ref, o_ref):
    x = x_ref[...]                                   # (TB, S)  streamed block
    # fc1 (transposed): h_T = W1 @ x^T -> (H, TB); batch lands on lanes.
    h_t = lax.dot_general(
        w1_ref[...], x, (((1,), (1,)), ((), ())),
        preferred_element_type=jnp.float32,
    ) + b1_ref[...]                                  # (H,1) column bias
    h_t = jnp.tanh(h_t)                              # lane-dense EUP tanh
    # fc2: logits_T = W2 @ h_T -> (A, TB); standard MXU orientation.
    logits_t = jnp.dot(
        w2_ref[...], h_t, preferred_element_type=jnp.float32
    ) + b2_ref[...]                                  # (A,1) column bias
    # Numerically stable softmax over the action axis (A=4 sublanes).
    m = jnp.max(logits_t, axis=0, keepdims=True)     # (1, TB)
    e = jnp.exp(logits_t - m)                        # lane-dense EUP exp
    denom = jnp.sum(e, axis=0, keepdims=True)        # (1, TB)
    o_ref[...] = (e / denom).astype(o_ref.dtype)     # exact normalization


def _round_up(n, m):
    return ((n + m - 1) // m) * m


@functools.partial(jax.jit, static_argnames=("block_b",))
def policy_forward(x, w1, b1, w2, b2, *, block_b=8192):
    """probs = softmax(tanh(x @ W1^T + b1) @ W2^T + b2, axis=-1).

    Weights use PyTorch nn.Linear layout: W1=(H,S), b1=(H,), W2=(A,H), b2=(A,).
    Returns (B, A) probabilities, matching the nn.Module forward.
    """
    B, S = x.shape
    H = w1.shape[0]
    A = w2.shape[0]

    # Batch tile = lane dimension of the transposed compute.  Multiple of 128 so
    # the output store is unmasked; >= 2 grid steps whenever B > 128 so the
    # "parallel" axis actually shards across v7x's two TensorCores.
    block_b = max(128, (block_b // 128) * 128)
    if B <= 128:
        tb = B                                        # full-extent block, grid=(1,)
    else:
        tb = min(block_b, max(128, _round_up(pl.cdiv(B, 2), 128)))
    grid = (pl.cdiv(B, tb),)

    b1c = b1.reshape(H, 1)                            # column biases for (H,TB)/(A,TB)
    b2c = b2.reshape(A, 1)

    out_t = pl.pallas_call(
        _policy_kernel,
        out_shape=jax.ShapeDtypeStruct((A, B), jnp.float32),
        grid=grid,
        in_specs=[
            pl.BlockSpec((tb, S), lambda i: (i, 0)),   # streamed activations
            pl.BlockSpec((H, S), lambda i: (0, 0)),    # VMEM-resident weights
            pl.BlockSpec((H, 1), lambda i: (0, 0)),
            pl.BlockSpec((A, H), lambda i: (0, 0)),
            pl.BlockSpec((A, 1), lambda i: (0, 0)),
        ],
        out_specs=pl.BlockSpec((A, tb), lambda i: (0, i)),  # lane-dense output
        compiler_params=pltpu.CompilerParams(
            dimension_semantics=("parallel",),         # megacore sharding on v7x
            vmem_limit_bytes=48 * 1024 * 1024,         # <= v7x 64 MiB physical
        ),
    )(x, w1, b1c, w2, b2c)

    # Kernel emits lane-dense (A, B); present the PyTorch (B, A) layout.  This
    # transpose is plain XLA plumbing outside the kernel on a tiny (4, B) array.
    return out_t.T


def init_params(key, state_dim, action_dim, hidden_dim=64):
    # Deterministic PyTorch-style init: U(-1/sqrt(fan_in), 1/sqrt(fan_in)),
    # weights stored in nn.Linear (out_features, in_features) layout.
    k1, k2, k3, k4 = jax.random.split(key, 4)
    bound1 = 1.0 / jnp.sqrt(jnp.float32(state_dim))
    bound2 = 1.0 / jnp.sqrt(jnp.float32(hidden_dim))
    w1 = jax.random.uniform(k1, (hidden_dim, state_dim), jnp.float32, -bound1, bound1)
    b1 = jax.random.uniform(k2, (hidden_dim,), jnp.float32, -bound1, bound1)
    w2 = jax.random.uniform(k3, (action_dim, hidden_dim), jnp.float32, -bound2, bound2)
    b2 = jax.random.uniform(k4, (action_dim,), jnp.float32, -bound2, bound2)
    return w1, b1, w2, b2


if __name__ == "__main__":
    state_dim, action_dim, hidden_dim = 8, 4, 64
    batch = 512   # small demo batch; splits into 2 grid steps of 256 rows

    key = jax.random.PRNGKey(0)
    kx, kp = jax.random.split(key)
    x = jax.random.normal(kx, (batch, state_dim), jnp.float32)
    w1, b1, w2, b2 = init_params(kp, state_dim, action_dim, hidden_dim)

    probs = policy_forward(x, w1, b1, w2, b2)
    jax.block_until_ready(probs)

    # Pure-JAX reference (matches the PyTorch module semantics).
    h_ref = jnp.tanh(x @ w1.T + b1)
    probs_ref = jax.nn.softmax(h_ref @ w2.T + b2, axis=-1)

    assert probs.shape == (batch, action_dim)
    assert jnp.allclose(probs, probs_ref, atol=1e-4, rtol=1e-4)
    assert jnp.allclose(jnp.sum(probs, axis=-1), 1.0, atol=1e-4)

    print("KERNEL_OK")
</pallas_src>

<mosaic_0001>
module attributes {stable_mosaic.version = 11 : i64} {
  func.func @_policy_kernel(%arg0: i32, %arg1: memref<256x8xf32, #tpu.memory_space<vmem>>, %arg2: memref<64x8xf32, #tpu.memory_space<vmem>>, %arg3: memref<64x1xf32, #tpu.memory_space<vmem>>, %arg4: memref<4x64xf32, #tpu.memory_space<vmem>>, %arg5: memref<4x1xf32, #tpu.memory_space<vmem>>, %arg6: memref<4x256xf32, #tpu.memory_space<vmem>>) attributes {dimension_semantics = [#tpu.dimension_semantics<parallel>], iteration_bounds = array<i64: 2>, scalar_prefetch = 0 : i64, scratch_operands = 0 : i64, tpu.core_type = #tpu.core_type<tc>, window_params = [{transform_indices = @transform_0, window_bounds = array<i64: 256, 8>}, {pipeline_mode = #tpu.pipeline_mode<synchronous>, transform_indices = @transform_1, window_bounds = array<i64: 64, 8>}, {pipeline_mode = #tpu.pipeline_mode<synchronous>, transform_indices = @transform_2, window_bounds = array<i64: 64, 1>}, {pipeline_mode = #tpu.pipeline_mode<synchronous>, transform_indices = @transform_3, window_bounds = array<i64: 4, 64>}, {pipeline_mode = #tpu.pipeline_mode<synchronous>, transform_indices = @transform_4, window_bounds = array<i64: 4, 1>}, {transform_indices = @transform_5, window_bounds = array<i64: 4, 256>}]} {
    %c0 = arith.constant 0 : index
    %c0_0 = arith.constant 0 : index
    %0 = vector.load %arg1[%c0, %c0_0] : memref<256x8xf32, #tpu.memory_space<vmem>>, vector<256x8xf32>
    %c0_1 = arith.constant 0 : index
    %c0_2 = arith.constant 0 : index
    %1 = vector.load %arg2[%c0_1, %c0_2] : memref<64x8xf32, #tpu.memory_space<vmem>>, vector<64x8xf32>
    %cst = arith.constant dense<0.000000e+00> : vector<64x256xf32>
    %2 = tpu.matmul %1, %0, %cst {dimension_numbers = #tpu.dot_dimension_numbers<[1], [1], [0], [0], [0, 0, 1, 0], [], []>} : vector<64x8xf32>, vector<256x8xf32>, vector<64x256xf32> -> vector<64x256xf32>
    %c0_3 = arith.constant 0 : index
    %c0_4 = arith.constant 0 : index
    %3 = vector.load %arg3[%c0_3, %c0_4] : memref<64x1xf32, #tpu.memory_space<vmem>>, vector<64x1xf32>
    %4 = vector.broadcast %3 : vector<64x1xf32> to vector<64x256xf32>
    %5 = arith.addf %2, %4 : vector<64x256xf32>
    %6 = math.tanh %5 : vector<64x256xf32>
    %c0_5 = arith.constant 0 : index
    %c0_6 = arith.constant 0 : index
    %7 = vector.load %arg4[%c0_5, %c0_6] : memref<4x64xf32, #tpu.memory_space<vmem>>, vector<4x64xf32>
    %cst_7 = arith.constant dense<0.000000e+00> : vector<4x256xf32>
    %8 = tpu.matmul %7, %6, %cst_7 {dimension_numbers = #tpu.dot_dimension_numbers<[1], [0], [0], [1], [0, 0, 1, 1], [], []>} : vector<4x64xf32>, vector<64x256xf32>, vector<4x256xf32> -> vector<4x256xf32>
    %c0_8 = arith.constant 0 : index
    %c0_9 = arith.constant 0 : index
    %9 = vector.load %arg5[%c0_8, %c0_9] : memref<4x1xf32, #tpu.memory_space<vmem>>, vector<4x1xf32>
    %10 = vector.broadcast %9 : vector<4x1xf32> to vector<4x256xf32>
    %11 = arith.addf %8, %10 : vector<4x256xf32>
    %cst_10 = arith.constant dense<0xFF800000> : vector<256xf32>
    %12 = vector.multi_reduction <maximumf>, %11, %cst_10 [0] : vector<4x256xf32> to vector<256xf32>
    %13 = vector.shape_cast %12 : vector<256xf32> to vector<1x256xf32>
    %14 = vector.broadcast %13 : vector<1x256xf32> to vector<4x256xf32>
    %15 = arith.subf %11, %14 : vector<4x256xf32>
    %16 = math.exp %15 : vector<4x256xf32>
    %cst_11 = arith.constant dense<0.000000e+00> : vector<256xf32>
    %17 = vector.multi_reduction <add>, %16, %cst_11 [0] : vector<4x256xf32> to vector<256xf32>
    %18 = vector.shape_cast %17 : vector<256xf32> to vector<1x256xf32>
    %19 = vector.broadcast %18 : vector<1x256xf32> to vector<4x256xf32>
    %20 = arith.divf %16, %19 : vector<4x256xf32>
    %c0_12 = arith.constant 0 : index
    %c0_13 = arith.constant 0 : index
    %21 = vector.load %arg6[%c0_12, %c0_13] : memref<4x256xf32, #tpu.memory_space<vmem>>, vector<4x256xf32>
    tpu.vector_store %arg6[%c0_12, %c0_13], %20 {strides = array<i32>} : memref<4x256xf32, #tpu.memory_space<vmem>>, vector<4x256xf32>,
    return
  }
  func.func @transform_0(%arg0: i32) -> (i32, i32) {
    %c0_i32 = arith.constant 0 : i32
    %c0_i32_0 = arith.constant 0 : i32
    return %arg0, %c0_i32 : i32, i32
  }
  func.func @transform_1(%arg0: i32) -> (i32, i32) {
    %c0_i32 = arith.constant 0 : i32
    %c0_i32_0 = arith.constant 0 : i32
    %c0_i32_1 = arith.constant 0 : i32
    return %c0_i32, %c0_i32_0 : i32, i32
  }
  func.func @transform_2(%arg0: i32) -> (i32, i32) {
    %c0_i32 = arith.constant 0 : i32
    %c0_i32_0 = arith.constant 0 : i32
    %c0_i32_1 = arith.constant 0 : i32
    return %c0_i32, %c0_i32_0 : i32, i32
  }
  func.func @transform_3(%arg0: i32) -> (i32, i32) {
    %c0_i32 = arith.constant 0 : i32
    %c0_i32_0 = arith.constant 0 : i32
    %c0_i32_1 = arith.constant 0 : i32
    return %c0_i32, %c0_i32_0 : i32, i32
  }
  func.func @transform_4(%arg0: i32) -> (i32, i32) {
    %c0_i32 = arith.constant 0 : i32
    %c0_i32_0 = arith.constant 0 : i32
    %c0_i32_1 = arith.constant 0 : i32
    return %c0_i32, %c0_i32_0 : i32, i32
  }
  func.func @transform_5(%arg0: i32) -> (i32, i32) {
    %c0_i32 = arith.constant 0 : i32
    %c0_i32_0 = arith.constant 0 : i32
    return %c0_i32, %arg0 : i32, i32
  }
}

</mosaic_0001>

<llo_original>
// kernel: policy_forward.1
$region0: #{policy_forward.1}
  #allocation0 [shape = 'u32[]', space=smem, size = 0x4, offset = 0x4, fixed_abs, tag = 'smem constant byte address 0x4 - core index']
  #allocation1 [shape = 'u32[144,128]{1,0:T(1,128)}', space=vmem, size = 0x12000, scoped, tag = 'internal scratch']
  %s0 = inlined_call_operand.vmem [shape: f32[512,8], index: 0, kind: input, shape index: {}]
  %s1 = inlined_call_operand.vmem [shape: f32[64,8], index: 1, kind: input, shape index: {}]
  %s2 = inlined_call_operand.vmem [shape: f32[64,1], index: 2, kind: input, shape index: {}]
  %s3 = inlined_call_operand.vmem [shape: f32[4,64], index: 3, kind: input, shape index: {}]
  %s4 = inlined_call_operand.vmem [shape: f32[4,1], index: 4, kind: input, shape index: {}]
  %s5 = inlined_call_operand.hbm [shape: f32[4,512], index: 5, kind: output, shape index: {}]
  %s6 = sld [smem:[#allocation0]]
  $region53: #{policy_forward.1} parent=0
    _
  %s8 = ssub.s32 1, %s6
  %s9 = scalar_select 0, %s8, %s6
  $region1: #{policy_forward.1} parent=0
    #allocation2 [shape = 'u8[8192]{0}', space=vmem, size = 0x2000, scoped, tag = 'output window, operand 0']
    #allocation3 [shape = 's32[2]{0}', space=sflag, size = 0x8, scoped, tag = 'scoped memory for policy_forward.1']
    %10 = vsyncpa [#allocation3], 0
    %s11 = scalar_lea.sflag [#allocation3], 1
    %12 = vsyncpa %s11, 0
    loop: start=0, step=1, limit=4
    $region2: #{policy_forward.1} parent=1 // loop_pre_header
      _
    $region3: #{policy_forward.1} parent=1 // loop_header
      %s14 = sphi 0, %s18
      %p15 = scmp.ge.s32.totalorder %s14, 4
      %s24 = sphi 0, %s26
      %s27 = sphi 0, %s24
      %s28 = sphi 0, %s27
      %s44 = sphi 0, %s28
      %s48 = sphi 0, %s48
      %s50 = sphi 0, %s48
      %s51 = sphi 0, %s50
      %s65 = sphi 0, %s51
      %s69 = sphi 0, %s69
      %s71 = sphi 0, %s69
      %s72 = sphi 0, %s71
      %s86 = sphi 0, %s72
      %s90 = sphi 0, %s90
      %s92 = sphi 0, %s90
      %s93 = sphi 0, %s92
      %s107 = sphi 0, %s93
      %s111 = sphi 0, %s111
      %s113 = sphi 0, %s111
      %s114 = sphi 0, %s113
      %s128 = sphi 0, %s114
      %s134 = sphi 0, %s136
      %s137 = sphi 0, %s134
      %s138 = sphi 0, %s137
      %s154 = sphi 0, %s138
    $region4: #{policy_forward.1} parent=1 // loop_header_branch
      %17 = sbr.rel (%p15) target = $region8
    $region5: #{policy_forward.1} parent=1 // loop_body
      %s19 = ssub.s32 %s14, 1
      %s20 = ssub.s32 %s14, 2
      %s21 = sadd.s32 %s14, 1
      %s22 = ssub.s32 %s14, %s21
      %p23 = scmp.eq.s32.totalorder %s22, 0
      %s25 = sadd.s32 %s24, 1
      %s26 = scalar_select %p23, %s24, %s25
      %p29 = pneg %p23
      %p30 = scmp.eq.s32.totalorder %s14, 1
      %p31 = por %p29, %p30
      %p32 = scmp.ne.s32.totalorder %s24, %s27
      %p33 = scmp.eq.s32.totalorder %s14, 0
      %p34 = por %p32, %p33
      %p35 = scmp.ne.s32.totalorder %s24, %s27
      %p36 = scmp.eq.s32.totalorder %s19, 1
      %p37 = por %p35, %p36
      %p38 = scmp.ne.s32.totalorder %s27, %s28
      %p39 = scmp.eq.s32.totalorder %s19, 0
      %p40 = por %p38, %p39
      %p41 = scmp.ne.s32.totalorder %s27, %s28
      %p42 = scmp.eq.s32.totalorder %s20, 1
      %p43 = por %p41, %p42
      %p45 = scmp.ne.s32.totalorder %s28, %s44
      %p46 = scmp.eq.s32.totalorder %s20, 0
      %p47 = por %p45, %p46
      %s49 = sadd.s32 %s48, 1
      %p52 = scmp.eq.s32.totalorder %s14, 1
      %p53 = scmp.ne.s32.totalorder %s48, %s50
      %p54 = scmp.eq.s32.totalorder %s14, 0
      %p55 = por %p53, %p54
      %p56 = scmp.ne.s32.totalorder %s48, %s50
      %p57 = scmp.eq.s32.totalorder %s19, 1
      %p58 = por %p56, %p57
      %p59 = scmp.ne.s32.totalorder %s50, %s51
      %p60 = scmp.eq.s32.totalorder %s19, 0
      %p61 = por %p59, %p60
      %p62 = scmp.ne.s32.totalorder %s50, %s51
      %p63 = scmp.eq.s32.totalorder %s20, 1
      %p64 = por %p62, %p63
      %p66 = scmp.ne.s32.totalorder %s51, %s65
      %p67 = scmp.eq.s32.totalorder %s20, 0
      %p68 = por %p66, %p67
      %s70 = sadd.s32 %s69, 1
      %p73 = scmp.eq.s32.totalorder %s14, 1
      %p74 = scmp.ne.s32.totalorder %s69, %s71
      %p75 = scmp.eq.s32.totalorder %s14, 0
      %p76 = por %p74, %p75
      %p77 = scmp.ne.s32.totalorder %s69, %s71
      %p78 = scmp.eq.s32.totalorder %s19, 1
      %p79 = por %p77, %p78
      %p80 = scmp.ne.s32.totalorder %s71, %s72
      %p81 = scmp.eq.s32.totalorder %s19, 0
      %p82 = por %p80, %p81
      %p83 = scmp.ne.s32.totalorder %s71, %s72
      %p84 = scmp.eq.s32.totalorder %s20, 1
      %p85 = por %p83, %p84
      %p87 = scmp.ne.s32.totalorder %s72, %s86
      %p88 = scmp.eq.s32.totalorder %s20, 0
      %p89 = por %p87, %p88
      %s91 = sadd.s32 %s90, 1
      %p94 = scmp.eq.s32.totalorder %s14, 1
      %p95 = scmp.ne.s32.totalorder %s90, %s92
      %p96 = scmp.eq.s32.totalorder %s14, 0
      %p97 = por %p95, %p96
      %p98 = scmp.ne.s32.totalorder %s90, %s92
      %p99 = scmp.eq.s32.totalorder %s19, 1
      %p100 = por %p98, %p99
      %p101 = scmp.ne.s32.totalorder %s92, %s93
      %p102 = scmp.eq.s32.totalorder %s19, 0
      %p103 = por %p101, %p102
      %p104 = scmp.ne.s32.totalorder %s92, %s93
      %p105 = scmp.eq.s32.totalorder %s20, 1
      %p106 = por %p104, %p105
      %p108 = scmp.ne.s32.totalorder %s93, %s107
      %p109 = scmp.eq.s32.totalorder %s20, 0
      %p110 = por %p108, %p109
      %s112 = sadd.s32 %s111, 1
      %p115 = scmp.eq.s32.totalorder %s14, 1
      %p116 = scmp.ne.s32.totalorder %s111, %s113
      %p117 = scmp.eq.s32.totalorder %s14, 0
      %p118 = por %p116, %p117
      %p119 = scmp.ne.s32.totalorder %s111, %s113
      %p120 = scmp.eq.s32.totalorder %s19, 1
      %p121 = por %p119, %p120
      %p122 = scmp.ne.s32.totalorder %s113, %s114
      %p123 = scmp.eq.s32.totalorder %s19, 0
      %p124 = por %p122, %p123
      %p125 = scmp.ne.s32.totalorder %s113, %s114
      %p126 = scmp.eq.s32.totalorder %s20, 1
      %p127 = por %p125, %p126
      %p129 = scmp.ne.s32.totalorder %s114, %s128
      %p130 = scmp.eq.s32.totalorder %s20, 0
      %p131 = por %p129, %p130
      %s132 = ssub.s32 %s14, %s21
      %p133 = scmp.eq.s32.totalorder %s132, 0
      %s135 = sadd.s32 %s134, 1
      %s136 = scalar_select %p133, %s134, %s135
      %p139 = pneg %p133
      %p140 = scmp.eq.s32.totalorder %s14, 1
      %p141 = por %p139, %p140
      %p142 = scmp.ne.s32.totalorder %s134, %s137
      %p143 = scmp.eq.s32.totalorder %s14, 0
      %p144 = por %p142, %p143
      %p145 = scmp.ne.s32.totalorder %s134, %s137
      %p146 = scmp.eq.s32.totalorder %s19, 1
      %p147 = por %p145, %p146
      %p148 = scmp.ne.s32.totalorder %s137, %s138
      %p149 = scmp.eq.s32.totalorder %s19, 0
      %p150 = por %p148, %p149
      %p151 = scmp.ne.s32.totalorder %s137, %s138
      %p152 = scmp.eq.s32.totalorder %s20, 1
      %p153 = por %p151, %p152
      %p155 = scmp.ne.s32.totalorder %s138, %s154
      %p156 = scmp.eq.s32.totalorder %s20, 0
      %p157 = por %p155, %p156
      %p158 = scmp.le.s32.totalorder 1, %s14
      %p159 = scmp.lt.s32.totalorder %s14, 3
      %p160 = pnand %p158, %p159
      %p161 = pneg %p160
      // Predicated region
      $region9: #{policy_forward.1} parent=5 // pred_check
        _
      $region10: #{policy_forward.1} parent=5 // pred_check_branch
        %163 = sbr.rel (%p160) target = $region12
      $region11: #{policy_forward.1} parent=5 // pred_region
        %s164 = ssub.s32 %s14, 1
        // Predicated region
        $region13: #{policy_forward.1} parent=11 // pred_check
          %p165 = pneg %p61
        $region14: #{policy_forward.1} parent=11 // pred_check_branch
          %167 = sbr.rel (%p165) target = $region16
        $region15: #{policy_forward.1} parent=11 // pred_region
          _
        $region16: #{policy_forward.1} parent=11 // pred_fallthru
          _
        // Predicated region
        $region17: #{policy_forward.1} parent=11 // pred_check
          %p168 = pneg %p82
        $region18: #{policy_forward.1} parent=11 // pred_check_branch
          %170 = sbr.rel (%p168) target = $region20
        $region19: #{policy_forward.1} parent=11 // pred_region
          _
        $region20: #{policy_forward.1} parent=11 // pred_fallthru
          _
        // Predicated region
        $region21: #{policy_forward.1} parent=11 // pred_check
          %p171 = pneg %p103
        $region22: #{policy_forward.1} parent=11 // pred_check_branch
          %173 = sbr.rel (%p171) target = $region24
        $region23: #{policy_forward.1} parent=11 // pred_region
          _
        $region24: #{policy_forward.1} parent=11 // pred_fallthru
          _
        // Predicated region
        $region25: #{policy_forward.1} parent=11 // pred_check
          %p174 = pneg %p124
        $region26: #{policy_forward.1} parent=11 // pred_check_branch
          %176 = sbr.rel (%p174) target = $region28
        $region27: #{policy_forward.1} parent=11 // pred_region
          _
        $region28: #{policy_forward.1} parent=11 // pred_fallthru
          _
      $region12: #{policy_forward.1} parent=5 // pred_fallthru
        _
      %p177 = scmp.lt.s32.totalorder %s14, 2
      // Predicated region
      $region29: #{policy_forward.1} parent=5 // pred_check
        %p178 = pneg %p177
      $region30: #{policy_forward.1} parent=5 // pred_check_branch
        %180 = sbr.rel (%p178) target = $region32
      $region31: #{policy_forward.1} parent=5 // pred_region
        // Predicated region
        $region33: #{policy_forward.1} parent=31 // pred_check
          %p181 = pneg %p34
        $region34: #{policy_forward.1} parent=31 // pred_check_branch
          %183 = sbr.rel (%p181) target = $region36
        $region35: #{policy_forward.1} parent=31 // pred_region
          %s184 = smul.u32 32, %s14
          %p185 = scmp.lt.s32.totalorder %s184, 63
          %s186 = scalar_select %p185, %s184, 63
          %s187 = smul.addr %s186, 8
          %s188 = scalar_lea.vmem %s0, %s187
          %s189 = smul.u32 32, %s14
        $region36: #{policy_forward.1} parent=31 // pred_fallthru
          _
      $region32: #{policy_forward.1} parent=5 // pred_fallthru
        _
      %p190 = scmp.le.s32.totalorder 1, %s14
      %p191 = scmp.lt.s32.totalorder %s14, 3
      %p192 = pnand %p190, %p191
      %p193 = pneg %p192
      // Predicated region
      $region37: #{policy_forward.1} parent=5 // pred_check
        _
      $region38: #{policy_forward.1} parent=5 // pred_check_branch
        %195 = sbr.rel (%p192) target = $region40
      $region39: #{policy_forward.1} parent=5 // pred_region
        %s196 = ssub.s32 %s14, 1
        %s197 = smul.u32 32, %s19
        %p198 = scmp.lt.s32.totalorder %s197, 63
        %s199 = scalar_select %p198, %s197, 63
        %s200 = smul.addr %s199, 8
        %s201 = scalar_lea.vmem %s0, %s200
        %p202 = pneg %p40
        %p203 = pneg %p37
        %p204 = pneg %p61
        %p205 = pneg %p58
        %p206 = pneg %p82
        %p207 = pneg %p79
        %p208 = pneg %p103
        %p209 = pneg %p100
        %p210 = pneg %p124
        %p211 = pneg %p121
        %p212 = pneg %p150
        %p213 = pneg %p147
        %s214 = sand.u32 %s137, 1
        %s215 = scalar_lea.sflag [#allocation3], %s214
        %s216 = sand.u32 %s137, 1
        %s217 = smul.addr %s216, 8
        %s218 = scalar_lea.vmem [#allocation2], %s217
        %s219 = smul.u32 32, %s19
        %p220 = scmp.lt.s32.totalorder %s219, 63
        %s221 = scalar_select %p220, %s219, 63
        %s222 = smul.addr %s221, 8
        %s223 = scalar_lea.vmem %s0, %s222
        %s224 = smul.u32 32, %s19
        %s225 = smul.u32 2, %s19
        %v226 = vld [vmem:[%s223] sm:$0xff]
        %v227 = vld [vmem:[%s223 + $0x8] sm:$0xff]
        %v228 = vld [vmem:[%s223 + $0x10] sm:$0xff]
        %v229 = vld [vmem:[%s223 + $0x18] sm:$0xff]
        %v230 = vld [vmem:[%s223 + $0x20] sm:$0xff]
        %v231 = vld [vmem:[%s223 + $0x28] sm:$0xff]
        %v232 = vld [vmem:[%s223 + $0x30] sm:$0xff]
        %v233 = vld [vmem:[%s223 + $0x38] sm:$0xff]
        %v234 = vld [vmem:[%s223 + $0x40] sm:$0xff]
        %v235 = vld [vmem:[%s223 + $0x48] sm:$0xff]
        %v236 = vld [vmem:[%s223 + $0x50] sm:$0xff]
        %v237 = vld [vmem:[%s223 + $0x58] sm:$0xff]
        %v238 = vld [vmem:[%s223 + $0x60] sm:$0xff]
        %v239 = vld [vmem:[%s223 + $0x68] sm:$0xff]
        %v240 = vld [vmem:[%s223 + $0x70] sm:$0xff]
        %v241 = vld [vmem:[%s223 + $0x78] sm:$0xff]
        %v242 = vld [vmem:[%s223 + $0x80] sm:$0xff]
        %v243 = vld [vmem:[%s223 + $0x88] sm:$0xff]
        %v244 = vld [vmem:[%s223 + $0x90] sm:$0xff]
        %v245 = vld [vmem:[%s223 + $0x98] sm:$0xff]
        %v246 = vld [vmem:[%s223 + $0xa0] sm:$0xff]
        %v247 = vld [vmem:[%s223 + $0xa8] sm:$0xff]
        %v248 = vld [vmem:[%s223 + $0xb0] sm:$0xff]
        %v249 = vld [vmem:[%s223 + $0xb8] sm:$0xff]
        %v250 = vld [vmem:[%s223 + $0xc0] sm:$0xff]
        %v251 = vld [vmem:[%s223 + $0xc8] sm:$0xff]
        %v252 = vld [vmem:[%s223 + $0xd0] sm:$0xff]
        %v253 = vld [vmem:[%s223 + $0xd8] sm:$0xff]
        %v254 = vld [vmem:[%s223 + $0xe0] sm:$0xff]
        %v255 = vld [vmem:[%s223 + $0xe8] sm:$0xff]
        %v256 = vld [vmem:[%s223 + $0xf0] sm:$0xff]
        %v257 = vld [vmem:[%s223 + $0xf8] sm:$0xff]
        %v258 = vld [vmem:[%s1] sm:$0xff]
        %v259 = vld [vmem:[%s1 + $0x8] sm:$0xff]
        %v260 = vld [vmem:[%s1 + $0x10] sm:$0xff]
        %v261 = vld [vmem:[%s1 + $0x18] sm:$0xff]
        %v262 = vld [vmem:[%s1 + $0x20] sm:$0xff]
        %v263 = vld [vmem:[%s1 + $0x28] sm:$0xff]
        %v264 = vld [vmem:[%s1 + $0x30] sm:$0xff]
        %v265 = vld [vmem:[%s1 + $0x38] sm:$0xff]
        %v266 = vld [vmem:[%s2] sm:$0xff]
        %v267 = vld [vmem:[%s2 + $0x8] sm:$0xff]
        %v268 = vld [vmem:[%s2 + $0x10] sm:$0xff]
        %v269 = vld [vmem:[%s2 + $0x18] sm:$0xff]
        %v270 = vld [vmem:[%s2 + $0x20] sm:$0xff]
        %v271 = vld [vmem:[%s2 + $0x28] sm:$0xff]
        %v272 = vld [vmem:[%s2 + $0x30] sm:$0xff]
        %v273 = vld [vmem:[%s2 + $0x38] sm:$0xff]
        %275 = vset.pattern.permute.xlu0 0
        %276 = vperm.xlu0 %275, %v266
        %v277 = vpop.permute.xlu0 %276
        %280 = vset.pattern.permute.xlu0 0
        %281 = vperm.xlu0 %280, %v267
        %v282 = vpop.permute.xlu0 %281
        %285 = vset.pattern.permute.xlu0 0
        %286 = vperm.xlu0 %285, %v268
        %v287 = vpop.permute.xlu0 %286
        %290 = vset.pattern.permute.xlu0 0
        %291 = vperm.xlu0 %290, %v269
        %v292 = vpop.permute.xlu0 %291
        %295 = vset.pattern.permute.xlu0 0
        %296 = vperm.xlu0 %295, %v270
        %v297 = vpop.permute.xlu0 %296
        %300 = vset.pattern.permute.xlu0 0
        %301 = vperm.xlu0 %300, %v271
        %v302 = vpop.permute.xlu0 %301
        %305 = vset.pattern.permute.xlu0 0
        %306 = vperm.xlu0 %305, %v272
        %v307 = vpop.permute.xlu0 %306
        %310 = vset.pattern.permute.xlu0 0
        %311 = vperm.xlu0 %310, %v273
        %v312 = vpop.permute.xlu0 %311
        %vm314 = vcmask 64512
        %v316 = vsel %vm314, %v258, 0
        %v319 = vsel %vm314, %v259, 0
        %v322 = vsel %vm314, %v260, 0
        %v325 = vsel %vm314, %v261, 0
        %v328 = vsel %vm314, %v262, 0
        %v331 = vsel %vm314, %v263, 0
        %v334 = vsel %vm314, %v264, 0
        %v337 = vsel %vm314, %v265, 0
        %v340 = vsel %vm314, %v226, 0
        %v343 = vsel %vm314, %v227, 0
        %v346 = vsel %vm314, %v228, 0
        %v349 = vsel %vm314, %v229, 0
        %v352 = vsel %vm314, %v230, 0
        %v355 = vsel %vm314, %v231, 0
        %v358 = vsel %vm314, %v232, 0
        %v361 = vsel %vm314, %v233, 0
        %v364 = vsel %vm314, %v234, 0
        %v367 = vsel %vm314, %v235, 0
        %v370 = vsel %vm314, %v236, 0
        %v373 = vsel %vm314, %v237, 0
        %v376 = vsel %vm314, %v238, 0
        %v379 = vsel %vm314, %v239, 0
        %v382 = vsel %vm314, %v240, 0
        %v385 = vsel %vm314, %v241, 0
        %v388 = vsel %vm314, %v242, 0
        %v391 = vsel %vm314, %v243, 0
        %v394 = vsel %vm314, %v244, 0
        %v397 = vsel %vm314, %v245, 0
        %v400 = vsel %vm314, %v246, 0
        %v403 = vsel %vm314, %v247, 0
        %v406 = vsel %vm314, %v248, 0
        %v409 = vsel %vm314, %v249, 0
        %v412 = vsel %vm314, %v250, 0
        %v415 = vsel %vm314, %v251, 0
        %v418 = vsel %vm314, %v252, 0
        %v421 = vsel %vm314, %v253, 0
        %v424 = vsel %vm314, %v254, 0
        %v427 = vsel %vm314, %v255, 0
        %v430 = vsel %vm314, %v256, 0
        %v433 = vsel %vm314, %v257, 0
        %435 = vmatprep.subr.mxu0 0.0
        %436 = vmatpush1.xpose.msra.mxu0 %v340
        %437 = vmatprep.subr.mxu0 0.0
        %438 = vmatpush1.xpose.msra.mxu0 %v343
        %439 = vmatprep.subr.mxu0 0.0
        %440 = vmatpush1.xpose.msra.mxu0 %v346
        %441 = vmatprep.subr.mxu0 0.0
        %442 = vmatpush1.xpose.msra.mxu0 %v349
        %443 = vmatprep.subr.mxu0 0.0
        %444 = vmatpush1.xpose.msra.mxu0 %v352
        %445 = vmatprep.subr.mxu0 0.0
        %446 = vmatpush1.xpose.msra.mxu0 %v355
        %447 = vmatprep.subr.mxu0 0.0
        %448 = vmatpush1.xpose.msra.mxu0 %v358
        %449 = vmatprep.subr.mxu0 0.0
        %450 = vmatpush1.xpose.msra.mxu0 %v361
        %451 = vmatprep.subr.mxu0 0.0
        %452 = vmatpush1.xpose.msra.mxu0 %v364
        %453 = vmatprep.subr.mxu0 0.0
        %454 = vmatpush1.xpose.msra.mxu0 %v367
        %455 = vmatprep.subr.mxu0 0.0
        %456 = vmatpush1.xpose.msra.mxu0 %v370
        %457 = vmatprep.subr.mxu0 0.0
        %458 = vmatpush1.xpose.msra.mxu0 %v373
        %459 = vmatprep.subr.mxu0 0.0
        %460 = vmatpush1.xpose.msra.mxu0 %v376
        %461 = vmatprep.subr.mxu0 0.0
        %462 = vmatpush1.xpose.msra.mxu0 %v379
        %463 = vmatprep.subr.mxu0 0.0
        %464 = vmatpush1.xpose.msra.mxu0 %v382
        %465 = vmatprep.subr.mxu0 0.0
        %466 = vmatpush1.xpose.msra.mxu0 %v385
        %467 = vmatprep.subr.mxu0 0.0
        %468 = vmatpush1.xpose.msra.mxu0 %v388
        %469 = vmatprep.subr.mxu0 0.0
        %470 = vmatpush1.xpose.msra.mxu0 %v391
        %471 = vmatprep.subr.mxu0 0.0
        %472 = vmatpush1.xpose.msra.mxu0 %v394
        %473 = vmatprep.subr.mxu0 0.0
        %474 = vmatpush1.xpose.msra.mxu0 %v397
        %475 = vmatprep.subr.mxu0 0.0
        %476 = vmatpush1.xpose.msra.mxu0 %v400
        %477 = vmatprep.subr.mxu0 0.0
        %478 = vmatpush1.xpose.msra.mxu0 %v403
        %479 = vmatprep.subr.mxu0 0.0
        %480 = vmatpush1.xpose.msra.mxu0 %v406
        %481 = vmatprep.subr.mxu0 0.0
        %482 = vmatpush1.xpose.msra.mxu0 %v409
        %483 = vmatprep.subr.mxu0 0.0
        %484 = vmatpush1.xpose.msra.mxu0 %v412
        %485 = vmatprep.subr.mxu0 0.0
        %486 = vmatpush1.xpose.msra.mxu0 %v415
        %487 = vmatprep.subr.mxu0 0.0
        %488 = vmatpush1.xpose.msra.mxu0 %v418
        %489 = vmatprep.subr.mxu0 0.0
        %490 = vmatpush1.xpose.msra.mxu0 %v421
        %491 = vmatprep.subr.mxu0 0.0
        %492 = vmatpush1.xpose.msra.mxu0 %v424
        %493 = vmatprep.subr.mxu0 0.0
        %494 = vmatpush1.xpose.msra.mxu0 %v427
        %495 = vmatprep.subr.mxu0 0.0
        %496 = vmatpush1.xpose.msra.mxu0 %v430
        %497 = vmatprep.subr.mxu0 0.0
        %498 = vmatpush1.xpose.msra.mxu0 %v433
        %499 = vmatprep.mubr.f32.mxu0 0.0
        %500 = vmatmul.mubr.f32.gmra.mrb[0].mxu0 %v316
        %v501 = vpop.f32.mrb[0].mxu0
        %v502 = vadd.f32 %v277, %v501
        %v503 = vpop.f32.mrb[0].mxu0
        %v504 = vadd.f32 %v277, %v503
        %505 = vmatprep.mubr.f32.mxu0 0.0
        %506 = vmatmul.mubr.f32.gmra.mrb[0].mxu0 %v319
        %v507 = vpop.f32.mrb[0].mxu0
        %v508 = vadd.f32 %v282, %v507
        %v509 = vpop.f32.mrb[0].mxu0
        %v510 = vadd.f32 %v282, %v509
        %511 = vmatprep.mubr.f32.mxu0 0.0
        %512 = vmatmul.mubr.f32.gmra.mrb[0].mxu0 %v322
        %v513 = vpop.f32.mrb[0].mxu0
        %v514 = vadd.f32 %v287, %v513
        %v515 = vpop.f32.mrb[0].mxu0
        %v516 = vadd.f32 %v287, %v515
        %517 = vmatprep.mubr.f32.mxu0 0.0
        %518 = vmatmul.mubr.f32.gmra.mrb[0].mxu0 %v325
        %v519 = vpop.f32.mrb[0].mxu0
        %v520 = vadd.f32 %v292, %v519
        %v521 = vpop.f32.mrb[0].mxu0
        %v522 = vadd.f32 %v292, %v521
        %523 = vmatprep.mubr.f32.mxu0 0.0
        %524 = vmatmul.mubr.f32.gmra.mrb[0].mxu0 %v328
        %v525 = vpop.f32.mrb[0].mxu0
        %v526 = vadd.f32 %v297, %v525
        %v527 = vpop.f32.mrb[0].mxu0
        %v528 = vadd.f32 %v297, %v527
        %529 = vmatprep.mubr.f32.mxu0 0.0
        %530 = vmatmul.mubr.f32.gmra.mrb[0].mxu0 %v331
        %v531 = vpop.f32.mrb[0].mxu0
        %v532 = vadd.f32 %v302, %v531
        %v533 = vpop.f32.mrb[0].mxu0
        %v534 = vadd.f32 %v302, %v533
        %535 = vmatprep.mubr.f32.mxu0 0.0
        %536 = vmatmul.mubr.f32.gmra.mrb[0].mxu0 %v334
        %v537 = vpop.f32.mrb[0].mxu0
        %v538 = vadd.f32 %v307, %v537
        %v539 = vpop.f32.mrb[0].mxu0
        %v540 = vadd.f32 %v307, %v539
        %541 = vmatprep.mubr.f32.mxu0 0.0
        %542 = vmatmul.mubr.f32.gmra.mrb[0].mxu0 %v337
        %v543 = vpop.f32.mrb[0].mxu0
        %v544 = vadd.f32 %v312, %v543
        %v545 = vpop.f32.mrb[0].mxu0
        %v546 = vadd.f32 %v312, %v545
        %547 = vdwg.mxu0
        %v548 = vtanh.pop %v502
        %v549 = vtanh.pop %v504
        %v550 = vtanh.pop %v508
        %v551 = vtanh.pop %v510
        %v552 = vtanh.pop %v514
        %v553 = vtanh.pop %v516
        %v554 = vtanh.pop %v520
        %v555 = vtanh.pop %v522
        %v556 = vtanh.pop %v526
        %v557 = vtanh.pop %v528
        %v558 = vtanh.pop %v532
        %v559 = vtanh.pop %v534
        %v560 = vtanh.pop %v538
        %v561 = vtanh.pop %v540
        %v562 = vtanh.pop %v544
        %v563 = vtanh.pop %v546
        %v564 = vld [vmem:[%s3] sm:$0xf]
        %v565 = vld [vmem:[%s4] sm:$0xf]
        %567 = vset.pattern.permute.xlu0 0
        %568 = vperm.xlu0 %567, %v565
        %v569 = vpop.permute.xlu0 %568
        %vm571 = vcmask 523264
        %v573 = vsel %vm571, %v564, 0
        %575 = vmatprep.subr.mxu0 %v549
        %576 = vmatpush1.msra.mxu0 %v548
        %577 = vmatprep.subr.mxu0 %v551
        %578 = vmatpush1.msra.mxu0 %v550
        %579 = vmatprep.subr.mxu0 %v553
        %580 = vmatpush1.msra.mxu0 %v552
        %581 = vmatprep.subr.mxu0 %v555
        %582 = vmatpush1.msra.mxu0 %v554
        %583 = vmatprep.subr.mxu0 %v557
        %584 = vmatpush1.msra.mxu0 %v556
        %585 = vmatprep.subr.mxu0 %v559
        %586 = vmatpush1.msra.mxu0 %v558
        %587 = vmatprep.subr.mxu0 %v561
        %588 = vmatpush1.msra.mxu0 %v560
        %589 = vmatprep.subr.mxu0 %v563
        %590 = vmatpush1.msra.mxu0 %v562
        %591 = vmatprep.subr.mxu0 0.0
        %592 = vmatpush1.msra.mxu0 0.0
        %593 = vmatprep.subr.mxu0 0.0
        %594 = vmatpush1.msra.mxu0 0.0
        %595 = vmatprep.subr.mxu0 0.0
        %596 = vmatpush1.msra.mxu0 0.0
        %597 = vmatprep.subr.mxu0 0.0
        %598 = vmatpush1.msra.mxu0 0.0
        %599 = vmatprep.subr.mxu0 0.0
        %600 = vmatpush1.msra.mxu0 0.0
        %601 = vmatprep.subr.mxu0 0.0
        %602 = vmatpush1.msra.mxu0 0.0
        %603 = vmatprep.subr.mxu0 0.0
        %604 = vmatpush1.msra.mxu0 0.0
        %605 = vmatprep.subr.mxu0 0.0
        %606 = vmatpush1.msra.mxu0 0.0
        %607 = vmatprep.subr.mxu0 0.0
        %608 = vmatpush1.msra.mxu0 0.0
        %609 = vmatprep.subr.mxu0 0.0
        %610 = vmatpush1.msra.mxu0 0.0
        %611 = vmatprep.subr.mxu0 0.0
        %612 = vmatpush1.msra.mxu0 0.0
        %613 = vmatprep.subr.mxu0 0.0
        %614 = vmatpush1.msra.mxu0 0.0
        %615 = vmatprep.subr.mxu0 0.0
        %616 = vmatpush1.msra.mxu0 0.0
        %617 = vmatprep.subr.mxu0 0.0
        %618 = vmatpush1.msra.mxu0 0.0
        %619 = vmatprep.subr.mxu0 0.0
        %620 = vmatpush1.msra.mxu0 0.0
        %621 = vmatprep.subr.mxu0 0.0
        %622 = vmatpush1.msra.mxu0 0.0
        %623 = vmatprep.subr.mxu0 0.0
        %624 = vmatpush1.msra.mxu0 0.0
        %625 = vmatprep.subr.mxu0 0.0
        %626 = vmatpush1.msra.mxu0 0.0
        %627 = vmatprep.subr.mxu0 0.0
        %628 = vmatpush1.msra.mxu0 0.0
        %629 = vmatprep.subr.mxu0 0.0
        %630 = vmatpush1.msra.mxu0 0.0
        %631 = vmatprep.subr.mxu0 0.0
        %632 = vmatpush1.msra.mxu0 0.0
        %633 = vmatprep.subr.mxu0 0.0
        %634 = vmatpush1.msra.mxu0 0.0
        %635 = vmatprep.subr.mxu0 0.0
        %636 = vmatpush1.msra.mxu0 0.0
        %637 = vmatprep.subr.mxu0 0.0
        %638 = vmatpush1.msra.mxu0 0.0
        %639 = vmatprep.mubr.f32.mxu0 0.0
        %640 = vmatmul.mubr.f32.gmra.mrb[0].mxu0 %v573
        %v641 = vpop.f32.mrb[0].mxu0
        %v642 = vadd.f32 %v569, %v641
        %v643 = vpop.f32.mrb[0].mxu0
        %v644 = vadd.f32 %v569, %v643
        %645 = vdwg.mxu0
        %vm646 = vcmask 1043456
        %v647 = vsel %vm646, %v642, -inf
        %v648 = vrot.slane %v647, 4
        %v649 = vmax.f32 %v647, %v648
        %v650 = vrot.slane %v649, 2
        %v651 = vmax.f32 %v649, %v650
        %v652 = vrot.slane %v651, 1
        %v653 = vmax.f32 %v651, %v652
        %v654 = vsel %vm646, %v644, -inf
        %v655 = vrot.slane %v654, 4
        %v656 = vmax.f32 %v654, %v655
        %v657 = vrot.slane %v656, 2
        %v658 = vmax.f32 %v656, %v657
        %v659 = vrot.slane %v658, 1
        %v660 = vmax.f32 %v658, %v659
        %v661 = vsub.f32 %v642, %v653
        %v662 = vsub.f32 %v644, %v660
        %v663 = vmul.f32 %v661, 1.442695
        %v664 = vpow.pop %v663
        %v665 = vmul.f32 %v662, 1.442695
        %v666 = vpow.pop %v665
        %v667 = vsel %vm646, %v664, 0.0
        %v668 = vrot.slane %v667, 4
        %v669 = vadd.f32 %v667, %v668
        %v670 = vrot.slane %v669, 2
        %v671 = vadd.f32 %v669, %v670
        %v672 = vrot.slane %v671, 1
        %v673 = vadd.f32 %v671, %v672
        %v674 = vsel %vm646, %v666, 0.0
        %v675 = vrot.slane %v674, 4
        %v676 = vadd.f32 %v674, %v675
        %v677 = vrot.slane %v676, 2
        %v678 = vadd.f32 %v676, %v677
        %v679 = vrot.slane %v678, 1
        %v680 = vadd.f32 %v678, %v679
        %v681 = vrcp.pop %v673
        %v682 = vmul.f32 %v664, %v681
        %v683 = vrcp.pop %v680
        %v684 = vmul.f32 %v666, %v683
        %v687 = vcombine.low %v682, %v684
        %689 = vst [vmem:[%s218] sm:$0xff] %v687
        %s690 = sand.u32 %s137, 1
        %s691 = scalar_lea.sflag [#allocation3], %s690
        %s692 = sand.u32 %s137, 1
        %s693 = smul.addr %s692, 8
        %s694 = scalar_lea.vmem [#allocation2], %s693
        // Predicated region
        $region41: #{policy_forward.1} parent=39 // pred_check
          %p695 = pneg %p147
        $region42: #{policy_forward.1} parent=39 // pred_check_branch
          %697 = sbr.rel (%p695) target = $region44
        $region43: #{policy_forward.1} parent=39 // pred_region
          %s698 = smul.u32 2, %s19
          %s700 = ssub.s32 128, 128
          %701 = vsyncadd %s691, %s700
          %s702 = smul.addr %s698, 64
          %s703 = scalar_lea.hbm %s5, %s702
          %s705 = sshll.u32 %s694, 4
          %s706 = int_to_ptr.vmem [resolvable:$true] %s705
          %708 = dma.vmem_to_hbm [thread:$0]  %s706, 128, %s703, %s691
        $region44: #{policy_forward.1} parent=39 // pred_fallthru
          _
      $region40: #{policy_forward.1} parent=5 // pred_fallthru
        _
      %p709 = scmp.le.s32.totalorder 2, %s14
      // Predicated region
      $region45: #{policy_forward.1} parent=5 // pred_check
        %p710 = pneg %p709
      $region46: #{policy_forward.1} parent=5 // pred_check_branch
        %712 = sbr.rel (%p710) target = $region48
      $region47: #{policy_forward.1} parent=5 // pred_region
        %s713 = ssub.s32 %s14, 2
        // Predicated region
        $region49: #{policy_forward.1} parent=47 // pred_check
          %p714 = pneg %p153
        $region50: #{policy_forward.1} parent=47 // pred_check_branch
          %716 = sbr.rel (%p714) target = $region52
        $region51: #{policy_forward.1} parent=47 // pred_region
          %s717 = sand.u32 %s138, 1
          %s718 = scalar_lea.sflag [#allocation3], %s717
          %s719 = sand.u32 %s138, 1
          %s720 = smul.addr %s719, 8
          %s721 = scalar_lea.vmem [#allocation2], %s720
          %722 = dma.done %s718, 128
        $region52: #{policy_forward.1} parent=47 // pred_fallthru
          _
      $region48: #{policy_forward.1} parent=5 // pred_fallthru
        _
    $region6: #{policy_forward.1} parent=1 // loop_footer
      %s18 = sadd.s32 1, %s14
    $region7: #{policy_forward.1} parent=1 // loop_footer_branch
      %13 = sbr.rel target = $region3
    $region8: #{policy_forward.1} parent=1 // loop_exit
      _
    %723 = vsyncpa [#allocation3], 1
    %s724 = scalar_lea.sflag [#allocation3], 1
    %725 = vsyncpa %s724, 1

</llo_original>
